<compile_context>
chip_gen: v7x
topology: tpu7x:2x2x1
jax: 0.10.0
libtpu: 0.0.40
codegen_flags: <defaults>
</compile_context>

<pallas_src>
import jax
import jax.numpy as jnp
from jax.experimental import pallas as pl
from jax.experimental.pallas import tpu as pltpu


def _round_up(n: int, m: int) -> int:
    return ((n + m - 1) // m) * m


# Conservative budget for the fully-resident path (fits v7x's 64 MiB VMEM).
_FUSED_VMEM_BUDGET = 48 * 1024 * 1024


# --------------------------------------------------------------------------
# Kernel 1: whole network in one grid step (all weights resident in VMEM).
# --------------------------------------------------------------------------
def _fused_all_layers_kernel(x_ref, w_ref, b_ref, o_ref):
    """x_ref: [B_pad, F], w_ref: [L, F, F] ([in, out]), b_ref: [L, 1, F],
    o_ref: [B_pad, F].  Static Python loop over layers -> fully unrolled."""
    n_layers = w_ref.shape[0]  # static
    act = x_ref[...]
    for i in range(n_layers - 1):
        y = jnp.dot(act, w_ref[i], preferred_element_type=jnp.float32) + b_ref[i]
        act = jnp.maximum(y, 0.0)
    i = n_layers - 1
    o_ref[...] = (
        jnp.dot(act, w_ref[i], preferred_element_type=jnp.float32) + b_ref[i]
    ).astype(o_ref.dtype)


# --------------------------------------------------------------------------
# Kernel 2: fallback, one grid step == one layer (per-layer weight prefetch).
# The output block (constant index map -> VMEM-resident across the layer
# axis) doubles as the running activation; no scratch buffer.
# --------------------------------------------------------------------------
def _layer_grid_kernel(x_ref, w_ref, b_ref, o_ref):
    layer = pl.program_id(0)
    last = pl.num_programs(0) - 1

    @pl.when(layer == 0)
    def _():
        o_ref[...] = x_ref[...]

    y = jnp.dot(o_ref[...], w_ref[0], preferred_element_type=jnp.float32) + b_ref[0]

    @pl.when(layer != last)
    def _():
        o_ref[...] = jnp.maximum(y, 0.0)

    @pl.when(layer == last)
    def _():
        o_ref[...] = y.astype(o_ref.dtype)


# --------------------------------------------------------------------------
# Parameter construction / packing.
# --------------------------------------------------------------------------
def init_test_model_params(key, input_size, hidden_size, output_size, n_hidden):
    """PyTorch-style params: nn.Linear weight is [out, in], bias is [out]."""

    def init_linear(k, fan_in, fan_out):
        kw, kb = jax.random.split(k)
        bound = 1.0 / jnp.sqrt(fan_in)
        w = jax.random.uniform(kw, (fan_out, fan_in), jnp.float32, -bound, bound)
        b = jax.random.uniform(kb, (fan_out,), jnp.float32, -bound, bound)
        return w, b

    keys = jax.random.split(key, 2 + n_hidden)
    params = {"linear1": init_linear(keys[0], input_size, hidden_size)}
    params["hidden"] = [
        init_linear(keys[1 + i], hidden_size, hidden_size) for i in range(n_hidden)
    ]
    params["linear2"] = init_linear(keys[1 + n_hidden], hidden_size, output_size)
    return params


def prepare_fused_params(params, input_size, hidden_size, output_size):
    """One-time: transpose to [in, out], zero-pad to lane-dense F, stack over L."""
    F = _round_up(max(input_size, hidden_size, output_size, 1), 128)

    layers = [params["linear1"]] + list(params["hidden"]) + [params["linear2"]]
    L = len(layers)

    w_all = jnp.zeros((L, F, F), jnp.float32)
    b_all = jnp.zeros((L, 1, F), jnp.float32)
    for i, (w, b) in enumerate(layers):
        wt = w.T  # [in, out]
        w_all = w_all.at[i, : wt.shape[0], : wt.shape[1]].set(wt)
        b_all = b_all.at[i, 0, : b.shape[0]].set(b)

    return {
        "W": w_all,            # [L, F, F]
        "B": b_all,            # [L, 1, F]
        "F": F,
        "input_size": input_size,
        "output_size": output_size,
    }


# --------------------------------------------------------------------------
# Forward.
# --------------------------------------------------------------------------
def fused_mlp_forward(prep, x, *, force_layer_grid=False):
    """x: [B, input_size] -> [B, output_size]."""
    B, in_size = x.shape
    assert in_size == prep["input_size"]
    F = prep["F"]
    W, Bias = prep["W"], prep["B"]
    L = W.shape[0]
    B_pad = _round_up(max(B, 8), 8)

    x_pad = jnp.zeros((B_pad, F), jnp.float32).at[:B, :in_size].set(x)

    out_bytes = B_pad * F * 4
    resident_bytes = x_pad.nbytes + W.nbytes + Bias.nbytes + out_bytes
    use_fused = (not force_layer_grid) and (
        2 * resident_bytes + (2 << 20) <= _FUSED_VMEM_BUDGET
    )

    if use_fused:
        # Single grid step: everything co-resident in VMEM, layers unrolled.
        vmem_limit = 2 * resident_bytes + (2 << 20)
        out_pad = pl.pallas_call(
            _fused_all_layers_kernel,
            out_shape=jax.ShapeDtypeStruct((B_pad, F), jnp.float32),
            grid=(1,),
            in_specs=[
                pl.BlockSpec((B_pad, F), lambda i: (0, 0)),
                pl.BlockSpec((L, F, F), lambda i: (0, 0, 0)),
                pl.BlockSpec((L, 1, F), lambda i: (0, 0, 0)),
            ],
            out_specs=pl.BlockSpec((B_pad, F), lambda i: (0, 0)),
            compiler_params=pltpu.CompilerParams(
                dimension_semantics=("arbitrary",),
                vmem_limit_bytes=int(vmem_limit),
            ),
        )(x_pad, W, Bias)
    else:
        # Per-layer pipeline: weight for layer l+1 is prefetched while layer l
        # runs on the MXU.  Output block (constant index map) carries the
        # activation across the layer axis.
        per_layer_bytes = F * F * 4 + F * 4
        vmem_limit = (
            2 * per_layer_bytes + 2 * x_pad.nbytes + 2 * out_bytes + (2 << 20)
        )
        out_pad = pl.pallas_call(
            _layer_grid_kernel,
            out_shape=jax.ShapeDtypeStruct((B_pad, F), jnp.float32),
            grid=(L,),
            in_specs=[
                pl.BlockSpec((B_pad, F), lambda l: (0, 0)),      # x (fetched once)
                pl.BlockSpec((1, F, F), lambda l: (l, 0, 0)),    # per-layer weight
                pl.BlockSpec((1, 1, F), lambda l: (l, 0, 0)),    # per-layer bias
            ],
            out_specs=pl.BlockSpec((B_pad, F), lambda l: (0, 0)),
            compiler_params=pltpu.CompilerParams(
                dimension_semantics=("arbitrary",),  # sequential layer chain
                vmem_limit_bytes=int(vmem_limit),
            ),
        )(x_pad, W, Bias)

    return out_pad[:B, : prep["output_size"]]


def reference_forward(params, x):
    w1, b1 = params["linear1"]
    h = jnp.maximum(x @ w1.T + b1, 0.0)
    for wh, bh in params["hidden"]:
        h = jnp.maximum(h @ wh.T + bh, 0.0)
    w2, b2 = params["linear2"]
    return h @ w2.T + b2


if __name__ == "__main__":
    input_size, hidden_size, output_size, n_hidden = 32, 32, 16, 2
    batch = 8

    key = jax.random.PRNGKey(0)
    kp, kx = jax.random.split(key)
    params = init_test_model_params(kp, input_size, hidden_size, output_size, n_hidden)
    prep = prepare_fused_params(params, input_size, hidden_size, output_size)
    x = jax.random.normal(kx, (batch, input_size), jnp.float32)

    ref = reference_forward(params, x)

    # Primary path: single-step fully-fused kernel.
    out = jax.block_until_ready(fused_mlp_forward(prep, x))
    assert out.shape == (batch, output_size)
    assert jnp.allclose(out, ref, atol=1e-4, rtol=1e-4), "fused path mismatch"

    # Fallback path (per-layer pipelined grid) exercised for correctness too.
    out_grid = jax.block_until_ready(
        fused_mlp_forward(prep, x, force_layer_grid=True)
    )
    assert out_grid.shape == (batch, output_size)
    assert jnp.allclose(out_grid, ref, atol=1e-4, rtol=1e-4), "grid path mismatch"

    print("KERNEL_OK")
</pallas_src>

<mosaic_0001>
module attributes {stable_mosaic.version = 11 : i64} {
  func.func @_fused_all_layers_kernel(%arg0: i32, %arg1: memref<8x128xf32, #tpu.memory_space<vmem>>, %arg2: memref<4x128x128xf32, #tpu.memory_space<vmem>>, %arg3: memref<4x1x128xf32, #tpu.memory_space<vmem>>, %arg4: memref<8x128xf32, #tpu.memory_space<vmem>>) attributes {dimension_semantics = [#tpu.dimension_semantics<arbitrary>], iteration_bounds = array<i64: 1>, scalar_prefetch = 0 : i64, scratch_operands = 0 : i64, tpu.core_type = #tpu.core_type<tc>, window_params = [{pipeline_mode = #tpu.pipeline_mode<synchronous>, transform_indices = @transform_0, window_bounds = array<i64: 8, 128>}, {pipeline_mode = #tpu.pipeline_mode<synchronous>, transform_indices = @transform_1, window_bounds = array<i64: 4, 128, 128>}, {pipeline_mode = #tpu.pipeline_mode<synchronous>, transform_indices = @transform_2, window_bounds = array<i64: 4, 1, 128>}, {pipeline_mode = #tpu.pipeline_mode<synchronous>, transform_indices = @transform_3, window_bounds = array<i64: 8, 128>}]} {
    %c0 = arith.constant 0 : index
    %c0_0 = arith.constant 0 : index
    %0 = vector.load %arg1[%c0, %c0_0] : memref<8x128xf32, #tpu.memory_space<vmem>>, vector<8x128xf32>
    %c0_1 = arith.constant 0 : index
    %c0_2 = arith.constant 0 : index
    %c0_3 = arith.constant 0 : index
    %1 = vector.load %arg2[%c0_1, %c0_2, %c0_3] : memref<4x128x128xf32, #tpu.memory_space<vmem>>, vector<1x128x128xf32>
    %2 = vector.shape_cast %1 : vector<1x128x128xf32> to vector<128x128xf32>
    %cst = arith.constant dense<0.000000e+00> : vector<8x128xf32>
    %3 = tpu.matmul %0, %2, %cst {dimension_numbers = #tpu.dot_dimension_numbers<[1], [0], [0], [1], [0, 0, 1, 1], [], []>} : vector<8x128xf32>, vector<128x128xf32>, vector<8x128xf32> -> vector<8x128xf32>
    %c0_4 = arith.constant 0 : index
    %c0_5 = arith.constant 0 : index
    %c0_6 = arith.constant 0 : index
    %4 = vector.load %arg3[%c0_4, %c0_5, %c0_6] : memref<4x1x128xf32, #tpu.memory_space<vmem>>, vector<1x1x128xf32>
    %5 = vector.shape_cast %4 : vector<1x1x128xf32> to vector<1x128xf32>
    %6 = vector.broadcast %5 : vector<1x128xf32> to vector<8x128xf32>
    %7 = arith.addf %3, %6 : vector<8x128xf32>
    %cst_7 = arith.constant 0.000000e+00 : f32
    %8 = vector.broadcast %cst_7 : f32 to vector<8x128xf32>
    %9 = arith.maximumf %7, %8 : vector<8x128xf32>
    %c1 = arith.constant 1 : index
    %c0_8 = arith.constant 0 : index
    %c0_9 = arith.constant 0 : index
    %10 = vector.load %arg2[%c1, %c0_8, %c0_9] : memref<4x128x128xf32, #tpu.memory_space<vmem>>, vector<1x128x128xf32>
    %11 = vector.shape_cast %10 : vector<1x128x128xf32> to vector<128x128xf32>
    %cst_10 = arith.constant dense<0.000000e+00> : vector<8x128xf32>
    %12 = tpu.matmul %9, %11, %cst_10 {dimension_numbers = #tpu.dot_dimension_numbers<[1], [0], [0], [1], [0, 0, 1, 1], [], []>} : vector<8x128xf32>, vector<128x128xf32>, vector<8x128xf32> -> vector<8x128xf32>
    %c1_11 = arith.constant 1 : index
    %c0_12 = arith.constant 0 : index
    %c0_13 = arith.constant 0 : index
    %13 = vector.load %arg3[%c1_11, %c0_12, %c0_13] : memref<4x1x128xf32, #tpu.memory_space<vmem>>, vector<1x1x128xf32>
    %14 = vector.shape_cast %13 : vector<1x1x128xf32> to vector<1x128xf32>
    %15 = vector.broadcast %14 : vector<1x128xf32> to vector<8x128xf32>
    %16 = arith.addf %12, %15 : vector<8x128xf32>
    %cst_14 = arith.constant 0.000000e+00 : f32
    %17 = vector.broadcast %cst_14 : f32 to vector<8x128xf32>
    %18 = arith.maximumf %16, %17 : vector<8x128xf32>
    %c2 = arith.constant 2 : index
    %c0_15 = arith.constant 0 : index
    %c0_16 = arith.constant 0 : index
    %19 = vector.load %arg2[%c2, %c0_15, %c0_16] : memref<4x128x128xf32, #tpu.memory_space<vmem>>, vector<1x128x128xf32>
    %20 = vector.shape_cast %19 : vector<1x128x128xf32> to vector<128x128xf32>
    %cst_17 = arith.constant dense<0.000000e+00> : vector<8x128xf32>
    %21 = tpu.matmul %18, %20, %cst_17 {dimension_numbers = #tpu.dot_dimension_numbers<[1], [0], [0], [1], [0, 0, 1, 1], [], []>} : vector<8x128xf32>, vector<128x128xf32>, vector<8x128xf32> -> vector<8x128xf32>
    %c2_18 = arith.constant 2 : index
    %c0_19 = arith.constant 0 : index
    %c0_20 = arith.constant 0 : index
    %22 = vector.load %arg3[%c2_18, %c0_19, %c0_20] : memref<4x1x128xf32, #tpu.memory_space<vmem>>, vector<1x1x128xf32>
    %23 = vector.shape_cast %22 : vector<1x1x128xf32> to vector<1x128xf32>
    %24 = vector.broadcast %23 : vector<1x128xf32> to vector<8x128xf32>
    %25 = arith.addf %21, %24 : vector<8x128xf32>
    %cst_21 = arith.constant 0.000000e+00 : f32
    %26 = vector.broadcast %cst_21 : f32 to vector<8x128xf32>
    %27 = arith.maximumf %25, %26 : vector<8x128xf32>
    %c3 = arith.constant 3 : index
    %c0_22 = arith.constant 0 : index
    %c0_23 = arith.constant 0 : index
    %28 = vector.load %arg2[%c3, %c0_22, %c0_23] : memref<4x128x128xf32, #tpu.memory_space<vmem>>, vector<1x128x128xf32>
    %29 = vector.shape_cast %28 : vector<1x128x128xf32> to vector<128x128xf32>
    %cst_24 = arith.constant dense<0.000000e+00> : vector<8x128xf32>
    %30 = tpu.matmul %27, %29, %cst_24 {dimension_numbers = #tpu.dot_dimension_numbers<[1], [0], [0], [1], [0, 0, 1, 1], [], []>} : vector<8x128xf32>, vector<128x128xf32>, vector<8x128xf32> -> vector<8x128xf32>
    %c3_25 = arith.constant 3 : index
    %c0_26 = arith.constant 0 : index
    %c0_27 = arith.constant 0 : index
    %31 = vector.load %arg3[%c3_25, %c0_26, %c0_27] : memref<4x1x128xf32, #tpu.memory_space<vmem>>, vector<1x1x128xf32>
    %32 = vector.shape_cast %31 : vector<1x1x128xf32> to vector<1x128xf32>
    %33 = vector.broadcast %32 : vector<1x128xf32> to vector<8x128xf32>
    %34 = arith.addf %30, %33 : vector<8x128xf32>
    %c0_28 = arith.constant 0 : index
    %c0_29 = arith.constant 0 : index
    %35 = vector.load %arg4[%c0_28, %c0_29] : memref<8x128xf32, #tpu.memory_space<vmem>>, vector<8x128xf32>
    tpu.vector_store %arg4[%c0_28, %c0_29], %34 {strides = array<i32>} : memref<8x128xf32, #tpu.memory_space<vmem>>, vector<8x128xf32>,
    return
  }
  func.func @transform_0(%arg0: i32) -> (i32, i32) {
    %c0_i32 = arith.constant 0 : i32
    %c0_i32_0 = arith.constant 0 : i32
    %c0_i32_1 = arith.constant 0 : i32
    return %c0_i32, %c0_i32_0 : i32, i32
  }
  func.func @transform_1(%arg0: i32) -> (i32, i32, i32) {
    %c0_i32 = arith.constant 0 : i32
    %c0_i32_0 = arith.constant 0 : i32
    %c0_i32_1 = arith.constant 0 : i32
    %c0_i32_2 = arith.constant 0 : i32
    return %c0_i32, %c0_i32_0, %c0_i32_1 : i32, i32, i32
  }
  func.func @transform_2(%arg0: i32) -> (i32, i32, i32) {
    %c0_i32 = arith.constant 0 : i32
    %c0_i32_0 = arith.constant 0 : i32
    %c0_i32_1 = arith.constant 0 : i32
    %c0_i32_2 = arith.constant 0 : i32
    return %c0_i32, %c0_i32_0, %c0_i32_1 : i32, i32, i32
  }
  func.func @transform_3(%arg0: i32) -> (i32, i32) {
    %c0_i32 = arith.constant 0 : i32
    %c0_i32_0 = arith.constant 0 : i32
    %c0_i32_1 = arith.constant 0 : i32
    return %c0_i32, %c0_i32_0 : i32, i32
  }
}

</mosaic_0001>

<llo_original>
// kernel: tpu_custom_call.1
$region0: #{tpu_custom_call.1}
  #allocation0 [shape = 'u32[]', space=smem, size = 0x4, offset = 0x4, fixed_abs, tag = 'smem constant byte address 0x4 - core index']
  #allocation1 [shape = 'u32[144,128]{1,0:T(1,128)}', space=vmem, size = 0x12000, scoped, tag = 'internal scratch']
  %s0 = inlined_call_operand.hbm [shape: f32[8,128], index: 0, kind: input, shape index: {}]
  %s1 = inlined_call_operand.hbm [shape: f32[4,128,128], index: 1, kind: input, shape index: {}]
  %s2 = inlined_call_operand.vmem [shape: f32[4,1,128], index: 2, kind: input, shape index: {}]
  %s3 = inlined_call_operand.hbm [shape: f32[8,128], index: 3, kind: output, shape index: {}]
  %s4 = sld [smem:[#allocation0]]
  $region30: #{tpu_custom_call.1} parent=0
    _
  %s6 = ssub.s32 1, %s4
  %s7 = scalar_select 0, %s6, %s4
  $region1: #{tpu_custom_call.1} parent=0
    #allocation2 [shape = 'u8[4096]{0}', space=vmem, size = 0x1000, scoped, tag = 'input window, operand 0, single buffered']
    #allocation3 [shape = 's32[1]{0}', space=sflag, size = 0x4, scoped, tag = 'scoped memory for tpu_custom_call.1']
    #allocation4 [shape = 's32[1]{0}', space=sflag, size = 0x4, scoped, tag = 'scoped memory for tpu_custom_call.1']
    #allocation5 [shape = 'u8[262144]{0}', space=vmem, size = 0x40000, scoped, tag = 'input window, operand 1, single buffered']
    #allocation6 [shape = 's32[1]{0}', space=sflag, size = 0x4, scoped, tag = 'scoped memory for tpu_custom_call.1']
    #allocation7 [shape = 'u8[4096]{0}', space=vmem, size = 0x1000, scoped, tag = 'output window, operand 0, single buffered']
    %8 = vsyncpa [#allocation3], 0
    %9 = vsyncpa [#allocation6], 0
    %10 = vsyncpa [#allocation4], 0
    // Predicated region
    $region2: #{tpu_custom_call.1} parent=1 // pred_check
      _
    $region3: #{tpu_custom_call.1} parent=1 // pred_check_branch
      %12 = sbr.rel (0) target = $region5
    $region4: #{tpu_custom_call.1} parent=1 // pred_region
      %s14 = ssub.s32 128, 128
      %15 = vsyncadd [#allocation3], %s14
      %s17 = sshll.u32 [#allocation2], 4
      %s18 = int_to_ptr.vmem [resolvable:$true] %s17
      %20 = dma.hbm_to_vmem [thread:$0]  %s0, 128, %s18, [#allocation3]
    $region5: #{tpu_custom_call.1} parent=1 // pred_fallthru
      _
    // Predicated region
    $region6: #{tpu_custom_call.1} parent=1 // pred_check
      _
    $region7: #{tpu_custom_call.1} parent=1 // pred_check_branch
      %22 = sbr.rel (0) target = $region9
    $region8: #{tpu_custom_call.1} parent=1 // pred_region
      %s24 = ssub.s32 8192, 8192
      %25 = vsyncadd [#allocation6], %s24
      %s26 = sshll.u32 [#allocation5], 4
      %s27 = int_to_ptr.vmem [resolvable:$true] %s26
      %32 = dma.hbm_to_vmem [thread:$0]  %s1, 8192, %s27, [#allocation6], 128, 128, 8
    $region9: #{tpu_custom_call.1} parent=1 // pred_fallthru
      _
    // Predicated region
    $region10: #{tpu_custom_call.1} parent=1 // pred_check
      _
    $region11: #{tpu_custom_call.1} parent=1 // pred_check_branch
      %34 = sbr.rel (0) target = $region13
    $region12: #{tpu_custom_call.1} parent=1 // pred_region
      _
    $region13: #{tpu_custom_call.1} parent=1 // pred_fallthru
      _
    // Predicated region
    $region14: #{tpu_custom_call.1} parent=1 // pred_check
      _
    $region15: #{tpu_custom_call.1} parent=1 // pred_check_branch
      %36 = sbr.rel (0) target = $region17
    $region16: #{tpu_custom_call.1} parent=1 // pred_region
      %37 = dma.done [#allocation3], 128
    $region17: #{tpu_custom_call.1} parent=1 // pred_fallthru
      _
    // Predicated region
    $region18: #{tpu_custom_call.1} parent=1 // pred_check
      _
    $region19: #{tpu_custom_call.1} parent=1 // pred_check_branch
      %39 = sbr.rel (0) target = $region21
    $region20: #{tpu_custom_call.1} parent=1 // pred_region
      %40 = dma.done [#allocation6], 8192
    $region21: #{tpu_custom_call.1} parent=1 // pred_fallthru
      _
    %v41 = vld [vmem:[#allocation2] sm:$0xff]
    %v42 = vld [vmem:[#allocation5] sm:$0xff]
    %v43 = vld [vmem:[#allocation5 + $0x8] sm:$0xff]
    %v44 = vld [vmem:[#allocation5 + $0x10] sm:$0xff]
    %v45 = vld [vmem:[#allocation5 + $0x18] sm:$0xff]
    %v46 = vld [vmem:[#allocation5 + $0x20] sm:$0xff]
    %v47 = vld [vmem:[#allocation5 + $0x28] sm:$0xff]
    %v48 = vld [vmem:[#allocation5 + $0x30] sm:$0xff]
    %v49 = vld [vmem:[#allocation5 + $0x38] sm:$0xff]
    %v50 = vld [vmem:[#allocation5 + $0x40] sm:$0xff]
    %v51 = vld [vmem:[#allocation5 + $0x48] sm:$0xff]
    %v52 = vld [vmem:[#allocation5 + $0x50] sm:$0xff]
    %v53 = vld [vmem:[#allocation5 + $0x58] sm:$0xff]
    %v54 = vld [vmem:[#allocation5 + $0x60] sm:$0xff]
    %v55 = vld [vmem:[#allocation5 + $0x68] sm:$0xff]
    %v56 = vld [vmem:[#allocation5 + $0x70] sm:$0xff]
    %v57 = vld [vmem:[#allocation5 + $0x78] sm:$0xff]
    %v58 = vld [vmem:[%s2] sm:$0x1]
    %v60 = vlaneseq
    %v61 = vshrl.u32 %v60, 7
    %v62 = vsub.s32 0, %v61
    %v63 = vrot.slane %v58, %v62
    %65 = vmatprep.subr.mxu0 0.0
    %66 = vmatpush1.msra.mxu0 %v42
    %67 = vmatprep.subr.mxu0 0.0
    %68 = vmatpush1.msra.mxu0 %v43
    %69 = vmatprep.subr.mxu0 0.0
    %70 = vmatpush1.msra.mxu0 %v44
    %71 = vmatprep.subr.mxu0 0.0
    %72 = vmatpush1.msra.mxu0 %v45
    %73 = vmatprep.subr.mxu0 0.0
    %74 = vmatpush1.msra.mxu0 %v46
    %75 = vmatprep.subr.mxu0 0.0
    %76 = vmatpush1.msra.mxu0 %v47
    %77 = vmatprep.subr.mxu0 0.0
    %78 = vmatpush1.msra.mxu0 %v48
    %79 = vmatprep.subr.mxu0 0.0
    %80 = vmatpush1.msra.mxu0 %v49
    %81 = vmatprep.subr.mxu0 0.0
    %82 = vmatpush1.msra.mxu0 %v50
    %83 = vmatprep.subr.mxu0 0.0
    %84 = vmatpush1.msra.mxu0 %v51
    %85 = vmatprep.subr.mxu0 0.0
    %86 = vmatpush1.msra.mxu0 %v52
    %87 = vmatprep.subr.mxu0 0.0
    %88 = vmatpush1.msra.mxu0 %v53
    %89 = vmatprep.subr.mxu0 0.0
    %90 = vmatpush1.msra.mxu0 %v54
    %91 = vmatprep.subr.mxu0 0.0
    %92 = vmatpush1.msra.mxu0 %v55
    %93 = vmatprep.subr.mxu0 0.0
    %94 = vmatpush1.msra.mxu0 %v56
    %95 = vmatprep.subr.mxu0 0.0
    %96 = vmatpush1.msra.mxu0 %v57
    %97 = vmatprep.subr.mxu0 0.0
    %98 = vmatpush1.msra.mxu0 0.0
    %99 = vmatprep.subr.mxu0 0.0
    %100 = vmatpush1.msra.mxu0 0.0
    %101 = vmatprep.subr.mxu0 0.0
    %102 = vmatpush1.msra.mxu0 0.0
    %103 = vmatprep.subr.mxu0 0.0
    %104 = vmatpush1.msra.mxu0 0.0
    %105 = vmatprep.subr.mxu0 0.0
    %106 = vmatpush1.msra.mxu0 0.0
    %107 = vmatprep.subr.mxu0 0.0
    %108 = vmatpush1.msra.mxu0 0.0
    %109 = vmatprep.subr.mxu0 0.0
    %110 = vmatpush1.msra.mxu0 0.0
    %111 = vmatprep.subr.mxu0 0.0
    %112 = vmatpush1.msra.mxu0 0.0
    %113 = vmatprep.subr.mxu0 0.0
    %114 = vmatpush1.msra.mxu0 0.0
    %115 = vmatprep.subr.mxu0 0.0
    %116 = vmatpush1.msra.mxu0 0.0
    %117 = vmatprep.subr.mxu0 0.0
    %118 = vmatpush1.msra.mxu0 0.0
    %119 = vmatprep.subr.mxu0 0.0
    %120 = vmatpush1.msra.mxu0 0.0
    %121 = vmatprep.subr.mxu0 0.0
    %122 = vmatpush1.msra.mxu0 0.0
    %123 = vmatprep.subr.mxu0 0.0
    %124 = vmatpush1.msra.mxu0 0.0
    %125 = vmatprep.subr.mxu0 0.0
    %126 = vmatpush1.msra.mxu0 0.0
    %127 = vmatprep.subr.mxu0 0.0
    %128 = vmatpush1.msra.mxu0 0.0
    %129 = vmatprep.mubr.f32.mxu0 0.0
    %130 = vmatmul.mubr.f32.gmra.mrb[0].mxu0 %v41
    %v131 = vpop.f32.mrb[0].mxu0
    %v132 = vadd.f32 %v63, %v131
    %v133 = vpop.f32.mrb[0].mxu0
    %134 = vdwg.mxu0
    %v135 = vmax.f32 %v132, 0.0
    %s136 = scalar_lea.vmem [#allocation5], 128
    %v137 = vld [vmem:[%s136] sm:$0xff]
    %v138 = vld [vmem:[%s136 + $0x8] sm:$0xff]
    %v139 = vld [vmem:[%s136 + $0x10] sm:$0xff]
    %v140 = vld [vmem:[%s136 + $0x18] sm:$0xff]
    %v141 = vld [vmem:[%s136 + $0x20] sm:$0xff]
    %v142 = vld [vmem:[%s136 + $0x28] sm:$0xff]
    %v143 = vld [vmem:[%s136 + $0x30] sm:$0xff]
    %v144 = vld [vmem:[%s136 + $0x38] sm:$0xff]
    %v145 = vld [vmem:[%s136 + $0x40] sm:$0xff]
    %v146 = vld [vmem:[%s136 + $0x48] sm:$0xff]
    %v147 = vld [vmem:[%s136 + $0x50] sm:$0xff]
    %v148 = vld [vmem:[%s136 + $0x58] sm:$0xff]
    %v149 = vld [vmem:[%s136 + $0x60] sm:$0xff]
    %v150 = vld [vmem:[%s136 + $0x68] sm:$0xff]
    %v151 = vld [vmem:[%s136 + $0x70] sm:$0xff]
    %v152 = vld [vmem:[%s136 + $0x78] sm:$0xff]
    %s153 = scalar_lea.vmem %s2, 1
    %v154 = vld [vmem:[%s153] sm:$0x1]
    %v156 = vlaneseq
    %v157 = vshrl.u32 %v156, 7
    %v158 = vsub.s32 0, %v157
    %v159 = vrot.slane %v154, %v158
    %161 = vmatprep.subr.mxu0 0.0
    %162 = vmatpush1.msra.mxu0 %v137
    %163 = vmatprep.subr.mxu0 0.0
    %164 = vmatpush1.msra.mxu0 %v138
    %165 = vmatprep.subr.mxu0 0.0
    %166 = vmatpush1.msra.mxu0 %v139
    %167 = vmatprep.subr.mxu0 0.0
    %168 = vmatpush1.msra.mxu0 %v140
    %169 = vmatprep.subr.mxu0 0.0
    %170 = vmatpush1.msra.mxu0 %v141
    %171 = vmatprep.subr.mxu0 0.0
    %172 = vmatpush1.msra.mxu0 %v142
    %173 = vmatprep.subr.mxu0 0.0
    %174 = vmatpush1.msra.mxu0 %v143
    %175 = vmatprep.subr.mxu0 0.0
    %176 = vmatpush1.msra.mxu0 %v144
    %177 = vmatprep.subr.mxu0 0.0
    %178 = vmatpush1.msra.mxu0 %v145
    %179 = vmatprep.subr.mxu0 0.0
    %180 = vmatpush1.msra.mxu0 %v146
    %181 = vmatprep.subr.mxu0 0.0
    %182 = vmatpush1.msra.mxu0 %v147
    %183 = vmatprep.subr.mxu0 0.0
    %184 = vmatpush1.msra.mxu0 %v148
    %185 = vmatprep.subr.mxu0 0.0
    %186 = vmatpush1.msra.mxu0 %v149
    %187 = vmatprep.subr.mxu0 0.0
    %188 = vmatpush1.msra.mxu0 %v150
    %189 = vmatprep.subr.mxu0 0.0
    %190 = vmatpush1.msra.mxu0 %v151
    %191 = vmatprep.subr.mxu0 0.0
    %192 = vmatpush1.msra.mxu0 %v152
    %193 = vmatprep.subr.mxu0 0.0
    %194 = vmatpush1.msra.mxu0 0.0
    %195 = vmatprep.subr.mxu0 0.0
    %196 = vmatpush1.msra.mxu0 0.0
    %197 = vmatprep.subr.mxu0 0.0
    %198 = vmatpush1.msra.mxu0 0.0
    %199 = vmatprep.subr.mxu0 0.0
    %200 = vmatpush1.msra.mxu0 0.0
    %201 = vmatprep.subr.mxu0 0.0
    %202 = vmatpush1.msra.mxu0 0.0
    %203 = vmatprep.subr.mxu0 0.0
    %204 = vmatpush1.msra.mxu0 0.0
    %205 = vmatprep.subr.mxu0 0.0
    %206 = vmatpush1.msra.mxu0 0.0
    %207 = vmatprep.subr.mxu0 0.0
    %208 = vmatpush1.msra.mxu0 0.0
    %209 = vmatprep.subr.mxu0 0.0
    %210 = vmatpush1.msra.mxu0 0.0
    %211 = vmatprep.subr.mxu0 0.0
    %212 = vmatpush1.msra.mxu0 0.0
    %213 = vmatprep.subr.mxu0 0.0
    %214 = vmatpush1.msra.mxu0 0.0
    %215 = vmatprep.subr.mxu0 0.0
    %216 = vmatpush1.msra.mxu0 0.0
    %217 = vmatprep.subr.mxu0 0.0
    %218 = vmatpush1.msra.mxu0 0.0
    %219 = vmatprep.subr.mxu0 0.0
    %220 = vmatpush1.msra.mxu0 0.0
    %221 = vmatprep.subr.mxu0 0.0
    %222 = vmatpush1.msra.mxu0 0.0
    %223 = vmatprep.subr.mxu0 0.0
    %224 = vmatpush1.msra.mxu0 0.0
    %225 = vmatprep.mubr.f32.mxu0 0.0
    %226 = vmatmul.mubr.f32.gmra.mrb[0].mxu0 %v135
    %v227 = vpop.f32.mrb[0].mxu0
    %v228 = vadd.f32 %v159, %v227
    %v229 = vpop.f32.mrb[0].mxu0
    %230 = vdwg.mxu0
    %v231 = vmax.f32 %v228, 0.0
    %s232 = scalar_lea.vmem [#allocation5], 256
    %v233 = vld [vmem:[%s232] sm:$0xff]
    %v234 = vld [vmem:[%s232 + $0x8] sm:$0xff]
    %v235 = vld [vmem:[%s232 + $0x10] sm:$0xff]
    %v236 = vld [vmem:[%s232 + $0x18] sm:$0xff]
    %v237 = vld [vmem:[%s232 + $0x20] sm:$0xff]
    %v238 = vld [vmem:[%s232 + $0x28] sm:$0xff]
    %v239 = vld [vmem:[%s232 + $0x30] sm:$0xff]
    %v240 = vld [vmem:[%s232 + $0x38] sm:$0xff]
    %v241 = vld [vmem:[%s232 + $0x40] sm:$0xff]
    %v242 = vld [vmem:[%s232 + $0x48] sm:$0xff]
    %v243 = vld [vmem:[%s232 + $0x50] sm:$0xff]
    %v244 = vld [vmem:[%s232 + $0x58] sm:$0xff]
    %v245 = vld [vmem:[%s232 + $0x60] sm:$0xff]
    %v246 = vld [vmem:[%s232 + $0x68] sm:$0xff]
    %v247 = vld [vmem:[%s232 + $0x70] sm:$0xff]
    %v248 = vld [vmem:[%s232 + $0x78] sm:$0xff]
    %s249 = scalar_lea.vmem %s2, 2
    %v250 = vld [vmem:[%s249] sm:$0x1]
    %v252 = vlaneseq
    %v253 = vshrl.u32 %v252, 7
    %v254 = vsub.s32 0, %v253
    %v255 = vrot.slane %v250, %v254
    %257 = vmatprep.subr.mxu0 0.0
    %258 = vmatpush1.msra.mxu0 %v233
    %259 = vmatprep.subr.mxu0 0.0
    %260 = vmatpush1.msra.mxu0 %v234
    %261 = vmatprep.subr.mxu0 0.0
    %262 = vmatpush1.msra.mxu0 %v235
    %263 = vmatprep.subr.mxu0 0.0
    %264 = vmatpush1.msra.mxu0 %v236
    %265 = vmatprep.subr.mxu0 0.0
    %266 = vmatpush1.msra.mxu0 %v237
    %267 = vmatprep.subr.mxu0 0.0
    %268 = vmatpush1.msra.mxu0 %v238
    %269 = vmatprep.subr.mxu0 0.0
    %270 = vmatpush1.msra.mxu0 %v239
    %271 = vmatprep.subr.mxu0 0.0
    %272 = vmatpush1.msra.mxu0 %v240
    %273 = vmatprep.subr.mxu0 0.0
    %274 = vmatpush1.msra.mxu0 %v241
    %275 = vmatprep.subr.mxu0 0.0
    %276 = vmatpush1.msra.mxu0 %v242
    %277 = vmatprep.subr.mxu0 0.0
    %278 = vmatpush1.msra.mxu0 %v243
    %279 = vmatprep.subr.mxu0 0.0
    %280 = vmatpush1.msra.mxu0 %v244
    %281 = vmatprep.subr.mxu0 0.0
    %282 = vmatpush1.msra.mxu0 %v245
    %283 = vmatprep.subr.mxu0 0.0
    %284 = vmatpush1.msra.mxu0 %v246
    %285 = vmatprep.subr.mxu0 0.0
    %286 = vmatpush1.msra.mxu0 %v247
    %287 = vmatprep.subr.mxu0 0.0
    %288 = vmatpush1.msra.mxu0 %v248
    %289 = vmatprep.subr.mxu0 0.0
    %290 = vmatpush1.msra.mxu0 0.0
    %291 = vmatprep.subr.mxu0 0.0
    %292 = vmatpush1.msra.mxu0 0.0
    %293 = vmatprep.subr.mxu0 0.0
    %294 = vmatpush1.msra.mxu0 0.0
    %295 = vmatprep.subr.mxu0 0.0
    %296 = vmatpush1.msra.mxu0 0.0
    %297 = vmatprep.subr.mxu0 0.0
    %298 = vmatpush1.msra.mxu0 0.0
    %299 = vmatprep.subr.mxu0 0.0
    %300 = vmatpush1.msra.mxu0 0.0
    %301 = vmatprep.subr.mxu0 0.0
    %302 = vmatpush1.msra.mxu0 0.0
    %303 = vmatprep.subr.mxu0 0.0
    %304 = vmatpush1.msra.mxu0 0.0
    %305 = vmatprep.subr.mxu0 0.0
    %306 = vmatpush1.msra.mxu0 0.0
    %307 = vmatprep.subr.mxu0 0.0
    %308 = vmatpush1.msra.mxu0 0.0
    %309 = vmatprep.subr.mxu0 0.0
    %310 = vmatpush1.msra.mxu0 0.0
    %311 = vmatprep.subr.mxu0 0.0
    %312 = vmatpush1.msra.mxu0 0.0
    %313 = vmatprep.subr.mxu0 0.0
    %314 = vmatpush1.msra.mxu0 0.0
    %315 = vmatprep.subr.mxu0 0.0
    %316 = vmatpush1.msra.mxu0 0.0
    %317 = vmatprep.subr.mxu0 0.0
    %318 = vmatpush1.msra.mxu0 0.0
    %319 = vmatprep.subr.mxu0 0.0
    %320 = vmatpush1.msra.mxu0 0.0
    %321 = vmatprep.mubr.f32.mxu0 0.0
    %322 = vmatmul.mubr.f32.gmra.mrb[0].mxu0 %v231
    %v323 = vpop.f32.mrb[0].mxu0
    %v324 = vadd.f32 %v255, %v323
    %v325 = vpop.f32.mrb[0].mxu0
    %326 = vdwg.mxu0
    %v327 = vmax.f32 %v324, 0.0
    %s328 = scalar_lea.vmem [#allocation5], 384
    %v329 = vld [vmem:[%s328] sm:$0xff]
    %v330 = vld [vmem:[%s328 + $0x8] sm:$0xff]
    %v331 = vld [vmem:[%s328 + $0x10] sm:$0xff]
    %v332 = vld [vmem:[%s328 + $0x18] sm:$0xff]
    %v333 = vld [vmem:[%s328 + $0x20] sm:$0xff]
    %v334 = vld [vmem:[%s328 + $0x28] sm:$0xff]
    %v335 = vld [vmem:[%s328 + $0x30] sm:$0xff]
    %v336 = vld [vmem:[%s328 + $0x38] sm:$0xff]
    %v337 = vld [vmem:[%s328 + $0x40] sm:$0xff]
    %v338 = vld [vmem:[%s328 + $0x48] sm:$0xff]
    %v339 = vld [vmem:[%s328 + $0x50] sm:$0xff]
    %v340 = vld [vmem:[%s328 + $0x58] sm:$0xff]
    %v341 = vld [vmem:[%s328 + $0x60] sm:$0xff]
    %v342 = vld [vmem:[%s328 + $0x68] sm:$0xff]
    %v343 = vld [vmem:[%s328 + $0x70] sm:$0xff]
    %v344 = vld [vmem:[%s328 + $0x78] sm:$0xff]
    %s345 = scalar_lea.vmem %s2, 3
    %v346 = vld [vmem:[%s345] sm:$0x1]
    %v348 = vlaneseq
    %v349 = vshrl.u32 %v348, 7
    %v350 = vsub.s32 0, %v349
    %v351 = vrot.slane %v346, %v350
    %353 = vmatprep.subr.mxu0 0.0
    %354 = vmatpush1.msra.mxu0 %v329
    %355 = vmatprep.subr.mxu0 0.0
    %356 = vmatpush1.msra.mxu0 %v330
    %357 = vmatprep.subr.mxu0 0.0
    %358 = vmatpush1.msra.mxu0 %v331
    %359 = vmatprep.subr.mxu0 0.0
    %360 = vmatpush1.msra.mxu0 %v332
    %361 = vmatprep.subr.mxu0 0.0
    %362 = vmatpush1.msra.mxu0 %v333
    %363 = vmatprep.subr.mxu0 0.0
    %364 = vmatpush1.msra.mxu0 %v334
    %365 = vmatprep.subr.mxu0 0.0
    %366 = vmatpush1.msra.mxu0 %v335
    %367 = vmatprep.subr.mxu0 0.0
    %368 = vmatpush1.msra.mxu0 %v336
    %369 = vmatprep.subr.mxu0 0.0
    %370 = vmatpush1.msra.mxu0 %v337
    %371 = vmatprep.subr.mxu0 0.0
    %372 = vmatpush1.msra.mxu0 %v338
    %373 = vmatprep.subr.mxu0 0.0
    %374 = vmatpush1.msra.mxu0 %v339
    %375 = vmatprep.subr.mxu0 0.0
    %376 = vmatpush1.msra.mxu0 %v340
    %377 = vmatprep.subr.mxu0 0.0
    %378 = vmatpush1.msra.mxu0 %v341
    %379 = vmatprep.subr.mxu0 0.0
    %380 = vmatpush1.msra.mxu0 %v342
    %381 = vmatprep.subr.mxu0 0.0
    %382 = vmatpush1.msra.mxu0 %v343
    %383 = vmatprep.subr.mxu0 0.0
    %384 = vmatpush1.msra.mxu0 %v344
    %385 = vmatprep.subr.mxu0 0.0
    %386 = vmatpush1.msra.mxu0 0.0
    %387 = vmatprep.subr.mxu0 0.0
    %388 = vmatpush1.msra.mxu0 0.0
    %389 = vmatprep.subr.mxu0 0.0
    %390 = vmatpush1.msra.mxu0 0.0
    %391 = vmatprep.subr.mxu0 0.0
    %392 = vmatpush1.msra.mxu0 0.0
    %393 = vmatprep.subr.mxu0 0.0
    %394 = vmatpush1.msra.mxu0 0.0
    %395 = vmatprep.subr.mxu0 0.0
    %396 = vmatpush1.msra.mxu0 0.0
    %397 = vmatprep.subr.mxu0 0.0
    %398 = vmatpush1.msra.mxu0 0.0
    %399 = vmatprep.subr.mxu0 0.0
    %400 = vmatpush1.msra.mxu0 0.0
    %401 = vmatprep.subr.mxu0 0.0
    %402 = vmatpush1.msra.mxu0 0.0
    %403 = vmatprep.subr.mxu0 0.0
    %404 = vmatpush1.msra.mxu0 0.0
    %405 = vmatprep.subr.mxu0 0.0
    %406 = vmatpush1.msra.mxu0 0.0
    %407 = vmatprep.subr.mxu0 0.0
    %408 = vmatpush1.msra.mxu0 0.0
    %409 = vmatprep.subr.mxu0 0.0
    %410 = vmatpush1.msra.mxu0 0.0
    %411 = vmatprep.subr.mxu0 0.0
    %412 = vmatpush1.msra.mxu0 0.0
    %413 = vmatprep.subr.mxu0 0.0
    %414 = vmatpush1.msra.mxu0 0.0
    %415 = vmatprep.subr.mxu0 0.0
    %416 = vmatpush1.msra.mxu0 0.0
    %417 = vmatprep.mubr.f32.mxu0 0.0
    %418 = vmatmul.mubr.f32.gmra.mrb[0].mxu0 %v327
    %v419 = vpop.f32.mrb[0].mxu0
    %v420 = vadd.f32 %v351, %v419
    %v421 = vpop.f32.mrb[0].mxu0
    %422 = vdwg.mxu0
    %423 = vst [vmem:[#allocation7] sm:$0xff] %v420
    // Predicated region
    $region22: #{tpu_custom_call.1} parent=1 // pred_check
      _
    $region23: #{tpu_custom_call.1} parent=1 // pred_check_branch
      %425 = sbr.rel (0) target = $region25
    $region24: #{tpu_custom_call.1} parent=1 // pred_region
      %s427 = ssub.s32 128, 128
      %428 = vsyncadd [#allocation4], %s427
      %s430 = sshll.u32 [#allocation7], 4
      %s431 = int_to_ptr.vmem [resolvable:$true] %s430
      %433 = dma.vmem_to_hbm [thread:$0]  %s431, 128, %s3, [#allocation4]
    $region25: #{tpu_custom_call.1} parent=1 // pred_fallthru
      _
    // Predicated region
    $region26: #{tpu_custom_call.1} parent=1 // pred_check
      _
    $region27: #{tpu_custom_call.1} parent=1 // pred_check_branch
      %435 = sbr.rel (0) target = $region29
    $region28: #{tpu_custom_call.1} parent=1 // pred_region
      %436 = dma.done [#allocation4], 128
    $region29: #{tpu_custom_call.1} parent=1 // pred_fallthru
      _
    %437 = vsyncpa [#allocation3], 1
    %438 = vsyncpa [#allocation6], 1
    %439 = vsyncpa [#allocation4], 1

</llo_original>
